<compile_context>
chip_gen: v7x
topology: tpu7x:2x2x1
jax: 0.10.0
libtpu: 0.0.40
codegen_flags: <defaults>
</compile_context>

<pallas_src>
import numpy as np

import jax
import jax.numpy as jnp
from jax.experimental import pallas as pl
from jax.experimental.pallas import tpu as pltpu

LEAKY_SLOPE = 0.2
BN_EPS = 1e-5

HALO_BLOCK = 8                        # sublane-aligned halo-fetch granularity
VMEM_LIMIT_BYTES = 32 * 1024 * 1024   # safe on v5e/v6e (128 MiB) and v7x (64 MiB)


# ----------------------------- Pallas kernels ------------------------------ #

def _bn_act(v, scale, shift):
    """Inference-mode BatchNorm affine + leaky_relu(0.2), in f32."""
    a = v.astype(jnp.float32) * scale + shift
    return jnp.where(a >= 0.0, a, LEAKY_SLOPE * a)


def _conv3x3_acc(abuf, xm_ref, xt_ref, xb_ref, scale_ref, shift_ref, t_ref, b_ref):
    """acc = conv3x3(leaky_relu(bn(x_rows))) + bias for one (1, TH, W*Cin) row block.

    The width dimension (incl. padding=1 along W) is folded into the Toeplitz
    weights t_ref[ky] of shape (W*Cin, W*Cout); height padding comes from the
    two halo rows, zeroed at the image boundary.  Three MXU matmuls with a
    lane-dense (TH, W*Cout) accumulator.
    """
    th = xm_ref.shape[1]
    r = pl.program_id(1)
    last = pl.num_programs(1) - 1

    scale = scale_ref[...]                                    # (1, W*Cin)
    shift = shift_ref[...]

    # Activated input rows r*TH-1 .. r*TH+TH laid out as abuf[0 .. TH+1].
    abuf[1:th + 1, :] = _bn_act(xm_ref[0], scale, shift)
    top = _bn_act(xt_ref[0, HALO_BLOCK - 1:HALO_BLOCK, :], scale, shift)
    bot = _bn_act(xb_ref[0, 0:1, :], scale, shift)
    abuf[0:1, :] = jnp.where(r == 0, 0.0, top)                # zero-pad row -1
    abuf[th + 1:th + 2, :] = jnp.where(r == last, 0.0, bot)   # zero-pad row H

    acc = jnp.dot(abuf[0:th, :], t_ref[0], preferred_element_type=jnp.float32)
    acc = acc + jnp.dot(abuf[1:th + 1, :], t_ref[1],
                        preferred_element_type=jnp.float32)
    acc = acc + jnp.dot(abuf[2:th + 2, :], t_ref[2],
                        preferred_element_type=jnp.float32)
    return acc + b_ref[...]                                   # (TH, W*Cout)


def _conv3x3_kernel(xm, xt, xb, sc, sh, t, b, o_ref, abuf):
    """h = conv3x3(actvn(norm_0(x)))   (first conv of the block)."""
    acc = _conv3x3_acc(abuf, xm, xt, xb, sc, sh, t, b)
    o_ref[0] = acc.astype(o_ref.dtype)


def _conv3x3_id_shortcut_kernel(xm, xt, xb, sc, sh, t, b, res, o_ref, abuf):
    """out = conv3x3(actvn(norm_1(h))) + x    (fused identity shortcut + add)."""
    acc = _conv3x3_acc(abuf, xm, xt, xb, sc, sh, t, b)
    o_ref[0] = (acc + res[0].astype(jnp.float32)).astype(o_ref.dtype)


def _conv3x3_learned_shortcut_kernel(xm, xt, xb, sc, sh, t, b,
                                     res, s_ref, sb_ref, o_ref, abuf):
    """out = conv3x3(actvn(norm_1(h))) + conv1x1(norm_s(x))
    (fused; the shortcut BN affine is folded into s_ref / sb_ref)."""
    acc = _conv3x3_acc(abuf, xm, xt, xb, sc, sh, t, b)
    xs = jnp.dot(res[0].astype(jnp.float32), s_ref[...],
                 preferred_element_type=jnp.float32) + sb_ref[...]
    o_ref[0] = (acc + xs).astype(o_ref.dtype)


# ----------------------------- pallas_call wrapper -------------------------- #

def _pick_row_tile(H, wc_in, wc_out, budget_bytes=8 << 20):
    """Largest 8-aligned divisor of H whose double-buffered per-step working
    set fits `budget_bytes` (conservative enough for v7x's 64 MiB VMEM)."""
    best = None
    for th in range(HALO_BLOCK, H + 1, HALO_BLOCK):
        if H % th:
            continue
        per_step = 4 * (th * wc_in                  # main input rows
                        + 2 * HALO_BLOCK * wc_in    # two halo blocks
                        + th * wc_out               # residual input (worst case)
                        + th * wc_out               # output rows
                        + (th + 2) * wc_in)         # f32 scratch
        if 2 * per_step <= budget_bytes:            # x2: double buffering
            best = th
    return best if best is not None else min(H, HALO_BLOCK)


def _run_conv_block(x_l, scale_t, shift_t, toeplitz, bias_t, shortcut=None, *,
                    row_tile, out_dtype):
    """One fused (bn -> leaky_relu -> conv3x3 [-> + shortcut]) pass.

    x_l and the output use the lane-fused (N, H, W*C) layout.
    shortcut: None | ("identity", x_l) | ("learned", x_l, S, sbias_t)
    """
    N, H, wc_in = x_l.shape
    wc_out = toeplitz.shape[2]
    th = row_tile
    assert H % HALO_BLOCK == 0, "height must be a multiple of 8"  # TODO(synk): general H
    assert H % th == 0 and th % HALO_BLOCK == 0, \
        "row_tile must be an 8-aligned divisor of H"
    hb = th // HALO_BLOCK                 # 8-row halo blocks per row tile
    n_rb = H // th

    def main_map(n, r):
        return (n, r, 0)

    def top_map(n, r):                    # 8-row block holding input row r*th-1
        return (n, jnp.maximum(r * hb - 1, 0), 0)

    def bot_map(n, r):                    # 8-row block holding input row r*th+th
        return (n, jnp.minimum((r + 1) * hb, H // HALO_BLOCK - 1), 0)

    def vec_map(n, r):
        return (0, 0)

    def t_map(n, r):
        return (0, 0, 0)

    in_specs = [
        pl.BlockSpec((1, th, wc_in), main_map),
        pl.BlockSpec((1, HALO_BLOCK, wc_in), top_map),
        pl.BlockSpec((1, HALO_BLOCK, wc_in), bot_map),
        pl.BlockSpec(scale_t.shape, vec_map),
        pl.BlockSpec(shift_t.shape, vec_map),
        pl.BlockSpec(toeplitz.shape, t_map),
        pl.BlockSpec(bias_t.shape, vec_map),
    ]
    inputs = [x_l, x_l, x_l, scale_t, shift_t, toeplitz, bias_t]

    if shortcut is None:
        kernel = _conv3x3_kernel
    elif shortcut[0] == "identity":
        kernel = _conv3x3_id_shortcut_kernel
        res = shortcut[1]
        in_specs.append(pl.BlockSpec((1, th, res.shape[2]), main_map))
        inputs.append(res)
    else:
        kernel = _conv3x3_learned_shortcut_kernel
        _, res, s_mat, sbias_t = shortcut
        in_specs += [pl.BlockSpec((1, th, res.shape[2]), main_map),
                     pl.BlockSpec(s_mat.shape, vec_map),
                     pl.BlockSpec(sbias_t.shape, vec_map)]
        inputs += [res, s_mat, sbias_t]

    return pl.pallas_call(
        kernel,
        out_shape=jax.ShapeDtypeStruct((N, H, wc_out), out_dtype),
        grid=(N, n_rb),
        in_specs=in_specs,
        out_specs=pl.BlockSpec((1, th, wc_out), main_map),
        scratch_shapes=[pltpu.VMEM((th + 2, wc_in), jnp.float32)],
        compiler_params=pltpu.CompilerParams(
            dimension_semantics=("parallel", "parallel"),
            vmem_limit_bytes=VMEM_LIMIT_BYTES),
    )(*inputs)


# ------------------------- parameter setup (plain JAX) ---------------------- #

def _l2n(v, eps=1e-12):
    return v / (jnp.sqrt(jnp.sum(v * v)) + eps)


def _spectral_norm(w, key):
    """One power iteration on the (out, -1) matrix view (PyTorch spectral_norm)."""
    w2 = w.reshape(w.shape[0], -1)
    u = _l2n(jax.random.normal(key, (w2.shape[0],), jnp.float32))
    v = _l2n(w2.T @ u)
    u = _l2n(w2 @ v)
    sigma = jnp.dot(u, w2 @ v)
    return w / sigma


def _conv_init(key, cout, cin, kh, kw, bias=True):
    kw_, kb = jax.random.split(key)
    fan_in = cin * kh * kw
    bound = 1.0 / (fan_in ** 0.5)
    w = jax.random.uniform(kw_, (cout, cin, kh, kw), jnp.float32, -bound, bound)
    b = jax.random.uniform(kb, (cout,), jnp.float32, -bound, bound) if bias else None
    return w, b


def _bn_init(key, c):
    kg, kb, km, kv = jax.random.split(key, 4)
    gamma = jax.random.uniform(kg, (c,), jnp.float32, 0.5, 1.5)
    beta = 0.1 * jax.random.normal(kb, (c,), jnp.float32)
    mean = 0.1 * jax.random.normal(km, (c,), jnp.float32)
    var = jax.random.uniform(kv, (c,), jnp.float32, 0.5, 1.5)
    scale = gamma / jnp.sqrt(var + BN_EPS)
    shift = beta - mean * scale
    return scale, shift


def _toeplitz_from_conv3x3(w_oihw, W):
    """(Cout,Cin,3,3) conv weight -> (3, W*Cin, W*Cout) width-Toeplitz matrices
    with padding=1 along W folded in.  Built once in numpy at setup time."""
    w = np.asarray(jax.device_get(w_oihw), np.float32)
    cout, cin = w.shape[0], w.shape[1]
    w_hwio = np.transpose(w, (2, 3, 1, 0))                 # (3, 3, Cin, Cout)
    t = np.zeros((3, W * cin, W * cout), np.float32)
    for ky in range(3):
        for kx in range(3):
            for col in range(W):
                src = col + kx - 1
                if 0 <= src < W:
                    t[ky, src * cin:(src + 1) * cin,
                      col * cout:(col + 1) * cout] = w_hwio[ky, kx]
    return jnp.asarray(t)


def _blockdiag_1x1(w_io, W):
    """(Cin, Cout) 1x1-conv weight -> block-diagonal (W*Cin, W*Cout)."""
    w = np.asarray(jax.device_get(w_io), np.float32)
    return jnp.asarray(np.kron(np.eye(W, dtype=np.float32), w))


def _tile_lane(v, W):
    """Per-channel vector (C,) -> lane-fused (1, W*C) row (index w*C+c -> v[c])."""
    v = jnp.asarray(v, jnp.float32)
    return jnp.tile(v, W).reshape(1, W * v.shape[0])


def init_resnet_block_params(key, fin, fout, W):
    fmiddle = min(fin, fout)
    learned = fin != fout
    ks = jax.random.split(key, 9)
    w0, b0 = _conv_init(ks[0], fmiddle, fin, 3, 3)
    w1, b1 = _conv_init(ks[1], fout, fmiddle, 3, 3)
    w0 = _spectral_norm(w0, ks[2])
    w1 = _spectral_norm(w1, ks[3])
    scale0, shift0 = _bn_init(ks[4], fin)
    scale1, shift1 = _bn_init(ks[5], fmiddle)

    p = dict(
        learned_shortcut=learned, fin=fin, fmiddle=fmiddle, fout=fout, W=W,
        # raw params (for the pure-JAX reference)
        w0_hwio=jnp.transpose(w0, (2, 3, 1, 0)), b0=b0,
        w1_hwio=jnp.transpose(w1, (2, 3, 1, 0)), b1=b1,
        scale0=scale0, shift0=shift0, scale1=scale1, shift1=shift1,
        # kernel-layout params (lane-fused (W*C) layout)
        T0=_toeplitz_from_conv3x3(w0, W),
        T1=_toeplitz_from_conv3x3(w1, W),
        scale0_t=_tile_lane(scale0, W), shift0_t=_tile_lane(shift0, W),
        scale1_t=_tile_lane(scale1, W), shift1_t=_tile_lane(shift1, W),
        b0_t=_tile_lane(b0, W), b1_t=_tile_lane(b1, W),
    )
    if learned:
        ws, _ = _conv_init(ks[6], fout, fin, 1, 1, bias=False)
        ws = _spectral_norm(ws, ks[7])
        scale_s, shift_s = _bn_init(ks[8], fin)
        ws2 = ws[:, :, 0, 0].T                              # (fin, fout)
        p.update(ws=ws2, scale_s=scale_s, shift_s=shift_s)
        # Fold the shortcut BN affine into the 1x1 conv (review item):
        #   conv1x1(x*s + t) = x @ (diag(s) @ ws) + (t @ ws)
        ws_fold = scale_s[:, None] * ws2                    # (fin, fout)
        sbias = shift_s @ ws2                               # (fout,)
        p['S'] = _blockdiag_1x1(ws_fold, W)                 # (W*fin, W*fout)
        p['sb_t'] = _tile_lane(sbias, W)                    # (1, W*fout)
    return p


# ------------------------------ forward (Pallas) ---------------------------- #

def resnet_block_forward(p, x_nchw, row_tile=None):
    N, C, H, W = x_nchw.shape
    assert C == p['fin'] and W == p['W']
    fmid, fout = p['fmiddle'], p['fout']

    # NCHW -> lane-fused (N, H, W*C).  Done once per block in this standalone
    # script; in a full network keep this layout end-to-end (review item).
    x = jnp.transpose(x_nchw, (0, 2, 3, 1)).astype(jnp.float32).reshape(N, H, W * C)

    if row_tile is None:
        row_tile = _pick_row_tile(H, W * max(C, fmid), W * max(fmid, fout))

    # conv_0:  h = conv3x3(actvn(norm_0(x)))
    h = _run_conv_block(x, p['scale0_t'], p['shift0_t'], p['T0'], p['b0_t'],
                        row_tile=row_tile, out_dtype=jnp.float32)

    # conv_1 fused with the shortcut path and the residual add.
    if p['learned_shortcut']:
        shortcut = ("learned", x, p['S'], p['sb_t'])
    else:
        shortcut = ("identity", x)
    out = _run_conv_block(h, p['scale1_t'], p['shift1_t'], p['T1'], p['b1_t'],
                          shortcut=shortcut, row_tile=row_tile,
                          out_dtype=jnp.float32)

    out = out.reshape(N, H, W, fout)
    return jnp.transpose(out, (0, 3, 1, 2))                 # back to NCHW


# ------------------------------ pure-JAX reference -------------------------- #

def ref_forward(p, x_nchw):
    x = jnp.transpose(x_nchw, (0, 2, 3, 1)).astype(jnp.float32)

    def bn(h, s, t):
        return h * s + t

    def act(h):
        return jnp.where(h >= 0, h, LEAKY_SLOPE * h)

    def conv3(h, w_hwio, b):
        y = jax.lax.conv_general_dilated(
            h, w_hwio, (1, 1), ((1, 1), (1, 1)),
            dimension_numbers=('NHWC', 'HWIO', 'NHWC'))
        return y + b

    h = conv3(act(bn(x, p['scale0'], p['shift0'])), p['w0_hwio'], p['b0'])
    dx = conv3(act(bn(h, p['scale1'], p['shift1'])), p['w1_hwio'], p['b1'])
    if p['learned_shortcut']:
        xs = jnp.einsum('nhwc,cd->nhwd', bn(x, p['scale_s'], p['shift_s']), p['ws'])
    else:
        xs = x
    return jnp.transpose(xs + dx, (0, 3, 1, 2))


# ----------------------------------- main ----------------------------------- #

if __name__ == "__main__":
    key = jax.random.PRNGKey(0)
    k_param, k_param2, k_x = jax.random.split(key, 3)
    N, H, W = 2, 16, 16

    # Case 1: learned shortcut (fin != fout), explicit 8-row tiles -> grid (2, 2)
    fin, fout = 4, 8
    params = init_resnet_block_params(k_param, fin, fout, W)
    x = jax.random.normal(k_x, (N, fin, H, W), jnp.float32)
    out = jax.block_until_ready(resnet_block_forward(params, x, row_tile=8))
    ref = ref_forward(params, x)
    assert out.shape == (N, fout, H, W)
    err = float(jnp.max(jnp.abs(out - ref)))
    assert jnp.allclose(out, ref, atol=5e-2, rtol=5e-2), \
        f"learned-shortcut mismatch, max err {err}"

    # Case 2: identity shortcut (fin == fout), auto-picked row tile
    params2 = init_resnet_block_params(k_param2, 4, 4, W)
    out2 = jax.block_until_ready(resnet_block_forward(params2, x))
    ref2 = ref_forward(params2, x)
    assert out2.shape == (N, 4, H, W)
    err2 = float(jnp.max(jnp.abs(out2 - ref2)))
    assert jnp.allclose(out2, ref2, atol=5e-2, rtol=5e-2), \
        f"identity-shortcut mismatch, max err {err2}"

    print("KERNEL_OK")
</pallas_src>

<mosaic_0001>
module attributes {stable_mosaic.version = 11 : i64} {
  func.func @_conv3x3_kernel(%arg0: i32, %arg1: i32, %arg2: memref<1x8x64xf32, #tpu.memory_space<vmem>>, %arg3: memref<1x8x64xf32, #tpu.memory_space<vmem>>, %arg4: memref<1x8x64xf32, #tpu.memory_space<vmem>>, %arg5: memref<1x64xf32, #tpu.memory_space<vmem>>, %arg6: memref<1x64xf32, #tpu.memory_space<vmem>>, %arg7: memref<3x64x64xf32, #tpu.memory_space<vmem>>, %arg8: memref<1x64xf32, #tpu.memory_space<vmem>>, %arg9: memref<1x8x64xf32, #tpu.memory_space<vmem>>, %arg10: memref<10x64xf32, #tpu.memory_space<vmem>>) attributes {dimension_semantics = [#tpu.dimension_semantics<parallel>, #tpu.dimension_semantics<parallel>], iteration_bounds = array<i64: 2, 2>, scalar_prefetch = 0 : i64, scratch_operands = 1 : i64, tpu.core_type = #tpu.core_type<tc>, window_params = [{transform_indices = @transform_0, window_bounds = array<i64: 1, 8, 64>}, {transform_indices = @transform_1, window_bounds = array<i64: 1, 8, 64>}, {transform_indices = @transform_2, window_bounds = array<i64: 1, 8, 64>}, {pipeline_mode = #tpu.pipeline_mode<synchronous>, transform_indices = @transform_3, window_bounds = array<i64: 1, 64>}, {pipeline_mode = #tpu.pipeline_mode<synchronous>, transform_indices = @transform_4, window_bounds = array<i64: 1, 64>}, {pipeline_mode = #tpu.pipeline_mode<synchronous>, transform_indices = @transform_5, window_bounds = array<i64: 3, 64, 64>}, {pipeline_mode = #tpu.pipeline_mode<synchronous>, transform_indices = @transform_6, window_bounds = array<i64: 1, 64>}, {transform_indices = @transform_7, window_bounds = array<i64: 1, 8, 64>}]} {
    %c0 = arith.constant 0 : index
    %c0_0 = arith.constant 0 : index
    %0 = vector.load %arg5[%c0, %c0_0] : memref<1x64xf32, #tpu.memory_space<vmem>>, vector<1x64xf32>
    %c0_1 = arith.constant 0 : index
    %c0_2 = arith.constant 0 : index
    %1 = vector.load %arg6[%c0_1, %c0_2] : memref<1x64xf32, #tpu.memory_space<vmem>>, vector<1x64xf32>
    %c0_3 = arith.constant 0 : index
    %c0_4 = arith.constant 0 : index
    %c0_5 = arith.constant 0 : index
    %2 = vector.load %arg2[%c0_3, %c0_4, %c0_5] : memref<1x8x64xf32, #tpu.memory_space<vmem>>, vector<1x8x64xf32>
    %3 = vector.shape_cast %2 : vector<1x8x64xf32> to vector<8x64xf32>
    %4 = vector.broadcast %0 : vector<1x64xf32> to vector<8x64xf32>
    %5 = arith.mulf %3, %4 : vector<8x64xf32>
    %6 = vector.broadcast %1 : vector<1x64xf32> to vector<8x64xf32>
    %7 = arith.addf %5, %6 : vector<8x64xf32>
    %cst = arith.constant 0.000000e+00 : f32
    %8 = vector.broadcast %cst : f32 to vector<8x64xf32>
    %9 = arith.cmpf oge, %7, %8 : vector<8x64xf32>
    %cst_6 = arith.constant 2.000000e-01 : f32
    %10 = vector.broadcast %cst_6 : f32 to vector<8x64xf32>
    %11 = arith.mulf %10, %7 : vector<8x64xf32>
    %12 = arith.select %9, %7, %11 : vector<8x64xi1>, vector<8x64xf32>
    %c1 = arith.constant 1 : index
    %c0_7 = arith.constant 0 : index
    %13 = vector.load %arg10[%c1, %c0_7] : memref<10x64xf32, #tpu.memory_space<vmem>>, vector<8x64xf32>
    tpu.vector_store %arg10[%c1, %c0_7], %12 {strides = array<i32>} : memref<10x64xf32, #tpu.memory_space<vmem>>, vector<8x64xf32>,
    %c0_8 = arith.constant 0 : index
    %c7 = arith.constant 7 : index
    %c0_9 = arith.constant 0 : index
    %14 = vector.load %arg3[%c0_8, %c7, %c0_9] : memref<1x8x64xf32, #tpu.memory_space<vmem>>, vector<1x1x64xf32>
    %15 = vector.shape_cast %14 : vector<1x1x64xf32> to vector<1x64xf32>
    %16 = arith.mulf %15, %0 : vector<1x64xf32>
    %17 = arith.addf %16, %1 : vector<1x64xf32>
    %cst_10 = arith.constant 0.000000e+00 : f32
    %18 = vector.broadcast %cst_10 : f32 to vector<1x64xf32>
    %19 = arith.cmpf oge, %17, %18 : vector<1x64xf32>
    %cst_11 = arith.constant 2.000000e-01 : f32
    %20 = vector.broadcast %cst_11 : f32 to vector<1x64xf32>
    %21 = arith.mulf %20, %17 : vector<1x64xf32>
    %22 = arith.select %19, %17, %21 : vector<1x64xi1>, vector<1x64xf32>
    %c0_12 = arith.constant 0 : index
    %c0_13 = arith.constant 0 : index
    %c0_14 = arith.constant 0 : index
    %23 = vector.load %arg4[%c0_12, %c0_13, %c0_14] : memref<1x8x64xf32, #tpu.memory_space<vmem>>, vector<1x1x64xf32>
    %24 = vector.shape_cast %23 : vector<1x1x64xf32> to vector<1x64xf32>
    %25 = arith.mulf %24, %0 : vector<1x64xf32>
    %26 = arith.addf %25, %1 : vector<1x64xf32>
    %cst_15 = arith.constant 0.000000e+00 : f32
    %27 = vector.broadcast %cst_15 : f32 to vector<1x64xf32>
    %28 = arith.cmpf oge, %26, %27 : vector<1x64xf32>
    %cst_16 = arith.constant 2.000000e-01 : f32
    %29 = vector.broadcast %cst_16 : f32 to vector<1x64xf32>
    %30 = arith.mulf %29, %26 : vector<1x64xf32>
    %31 = arith.select %28, %26, %30 : vector<1x64xi1>, vector<1x64xf32>
    %c0_i32 = arith.constant 0 : i32
    %32 = arith.cmpi eq, %arg1, %c0_i32 : i32
    %cst_17 = arith.constant 0.000000e+00 : f32
    %33 = vector.broadcast %cst_17 : f32 to vector<1x64xf32>
    %34 = arith.select %32, %33, %22 : vector<1x64xf32>
    %c0_18 = arith.constant 0 : index
    %c0_19 = arith.constant 0 : index
    %35 = vector.load %arg10[%c0_18, %c0_19] : memref<10x64xf32, #tpu.memory_space<vmem>>, vector<1x64xf32>
    tpu.vector_store %arg10[%c0_18, %c0_19], %34 {strides = array<i32>} : memref<10x64xf32, #tpu.memory_space<vmem>>, vector<1x64xf32>,
    %c1_i32 = arith.constant 1 : i32
    %36 = arith.cmpi eq, %arg1, %c1_i32 : i32
    %cst_20 = arith.constant 0.000000e+00 : f32
    %37 = vector.broadcast %cst_20 : f32 to vector<1x64xf32>
    %38 = arith.select %36, %37, %31 : vector<1x64xf32>
    %c9 = arith.constant 9 : index
    %c0_21 = arith.constant 0 : index
    %39 = vector.load %arg10[%c9, %c0_21] : memref<10x64xf32, #tpu.memory_space<vmem>>, vector<1x64xf32>
    tpu.vector_store %arg10[%c9, %c0_21], %38 {strides = array<i32>} : memref<10x64xf32, #tpu.memory_space<vmem>>, vector<1x64xf32>,
    %c0_22 = arith.constant 0 : index
    %c0_23 = arith.constant 0 : index
    %40 = vector.load %arg10[%c0_22, %c0_23] : memref<10x64xf32, #tpu.memory_space<vmem>>, vector<8x64xf32>
    %c0_24 = arith.constant 0 : index
    %c0_25 = arith.constant 0 : index
    %c0_26 = arith.constant 0 : index
    %41 = vector.load %arg7[%c0_24, %c0_25, %c0_26] : memref<3x64x64xf32, #tpu.memory_space<vmem>>, vector<1x64x64xf32>
    %42 = vector.shape_cast %41 : vector<1x64x64xf32> to vector<64x64xf32>
    %cst_27 = arith.constant dense<0.000000e+00> : vector<8x64xf32>
    %43 = tpu.matmul %40, %42, %cst_27 {dimension_numbers = #tpu.dot_dimension_numbers<[1], [0], [0], [1], [0, 0, 1, 1], [], []>} : vector<8x64xf32>, vector<64x64xf32>, vector<8x64xf32> -> vector<8x64xf32>
    %c1_28 = arith.constant 1 : index
    %c0_29 = arith.constant 0 : index
    %44 = vector.load %arg10[%c1_28, %c0_29] : memref<10x64xf32, #tpu.memory_space<vmem>>, vector<8x64xf32>
    %c1_30 = arith.constant 1 : index
    %c0_31 = arith.constant 0 : index
    %c0_32 = arith.constant 0 : index
    %45 = vector.load %arg7[%c1_30, %c0_31, %c0_32] : memref<3x64x64xf32, #tpu.memory_space<vmem>>, vector<1x64x64xf32>
    %46 = vector.shape_cast %45 : vector<1x64x64xf32> to vector<64x64xf32>
    %cst_33 = arith.constant dense<0.000000e+00> : vector<8x64xf32>
    %47 = tpu.matmul %44, %46, %cst_33 {dimension_numbers = #tpu.dot_dimension_numbers<[1], [0], [0], [1], [0, 0, 1, 1], [], []>} : vector<8x64xf32>, vector<64x64xf32>, vector<8x64xf32> -> vector<8x64xf32>
    %48 = arith.addf %43, %47 : vector<8x64xf32>
    %c2 = arith.constant 2 : index
    %c0_34 = arith.constant 0 : index
    %49 = vector.load %arg10[%c2, %c0_34] : memref<10x64xf32, #tpu.memory_space<vmem>>, vector<8x64xf32>
    %c2_35 = arith.constant 2 : index
    %c0_36 = arith.constant 0 : index
    %c0_37 = arith.constant 0 : index
    %50 = vector.load %arg7[%c2_35, %c0_36, %c0_37] : memref<3x64x64xf32, #tpu.memory_space<vmem>>, vector<1x64x64xf32>
    %51 = vector.shape_cast %50 : vector<1x64x64xf32> to vector<64x64xf32>
    %cst_38 = arith.constant dense<0.000000e+00> : vector<8x64xf32>
    %52 = tpu.matmul %49, %51, %cst_38 {dimension_numbers = #tpu.dot_dimension_numbers<[1], [0], [0], [1], [0, 0, 1, 1], [], []>} : vector<8x64xf32>, vector<64x64xf32>, vector<8x64xf32> -> vector<8x64xf32>
    %53 = arith.addf %48, %52 : vector<8x64xf32>
    %c0_39 = arith.constant 0 : index
    %c0_40 = arith.constant 0 : index
    %54 = vector.load %arg8[%c0_39, %c0_40] : memref<1x64xf32, #tpu.memory_space<vmem>>, vector<1x64xf32>
    %55 = vector.broadcast %54 : vector<1x64xf32> to vector<8x64xf32>
    %56 = arith.addf %53, %55 : vector<8x64xf32>
    %c0_41 = arith.constant 0 : index
    %c0_42 = arith.constant 0 : index
    %c0_43 = arith.constant 0 : index
    %57 = vector.load %arg9[%c0_41, %c0_42, %c0_43] : memref<1x8x64xf32, #tpu.memory_space<vmem>>, vector<1x8x64xf32>
    %58 = vector.shape_cast %57 : vector<1x8x64xf32> to vector<8x64xf32>
    %59 = vector.shape_cast %56 : vector<8x64xf32> to vector<1x8x64xf32>
    tpu.vector_store %arg9[%c0_41, %c0_42, %c0_43], %59 {strides = array<i32>} : memref<1x8x64xf32, #tpu.memory_space<vmem>>, vector<1x8x64xf32>,
    return
  }
  func.func @transform_0(%arg0: i32, %arg1: i32) -> (i32, i32, i32) {
    %c0_i32 = arith.constant 0 : i32
    %c0_i32_0 = arith.constant 0 : i32
    return %arg0, %arg1, %c0_i32 : i32, i32, i32
  }
  func.func @transform_1(%arg0: i32, %arg1: i32) -> (i32, i32, i32) {
    %c1_i32 = arith.constant 1 : i32
    %0 = arith.muli %arg1, %c1_i32 : i32
    %c1_i32_0 = arith.constant 1 : i32
    %1 = arith.subi %0, %c1_i32_0 : i32
    %c0_i32 = arith.constant 0 : i32
    %2 = arith.maxsi %1, %c0_i32 : i32
    %c0_i32_1 = arith.constant 0 : i32
    %c0_i32_2 = arith.constant 0 : i32
    return %arg0, %2, %c0_i32_1 : i32, i32, i32
  }
  func.func @transform_2(%arg0: i32, %arg1: i32) -> (i32, i32, i32) {
    %c1_i32 = arith.constant 1 : i32
    %0 = arith.addi %arg1, %c1_i32 : i32
    %c1_i32_0 = arith.constant 1 : i32
    %1 = arith.muli %0, %c1_i32_0 : i32
    %c1_i32_1 = arith.constant 1 : i32
    %2 = arith.minsi %1, %c1_i32_1 : i32
    %c0_i32 = arith.constant 0 : i32
    %c0_i32_2 = arith.constant 0 : i32
    return %arg0, %2, %c0_i32 : i32, i32, i32
  }
  func.func @transform_3(%arg0: i32, %arg1: i32) -> (i32, i32) {
    %c0_i32 = arith.constant 0 : i32
    %c0_i32_0 = arith.constant 0 : i32
    %c0_i32_1 = arith.constant 0 : i32
    return %c0_i32, %c0_i32_0 : i32, i32
  }
  func.func @transform_4(%arg0: i32, %arg1: i32) -> (i32, i32) {
    %c0_i32 = arith.constant 0 : i32
    %c0_i32_0 = arith.constant 0 : i32
    %c0_i32_1 = arith.constant 0 : i32
    return %c0_i32, %c0_i32_0 : i32, i32
  }
  func.func @transform_5(%arg0: i32, %arg1: i32) -> (i32, i32, i32) {
    %c0_i32 = arith.constant 0 : i32
    %c0_i32_0 = arith.constant 0 : i32
    %c0_i32_1 = arith.constant 0 : i32
    %c0_i32_2 = arith.constant 0 : i32
    return %c0_i32, %c0_i32_0, %c0_i32_1 : i32, i32, i32
  }
  func.func @transform_6(%arg0: i32, %arg1: i32) -> (i32, i32) {
    %c0_i32 = arith.constant 0 : i32
    %c0_i32_0 = arith.constant 0 : i32
    %c0_i32_1 = arith.constant 0 : i32
    return %c0_i32, %c0_i32_0 : i32, i32
  }
  func.func @transform_7(%arg0: i32, %arg1: i32) -> (i32, i32, i32) {
    %c0_i32 = arith.constant 0 : i32
    %c0_i32_0 = arith.constant 0 : i32
    return %arg0, %arg1, %c0_i32 : i32, i32, i32
  }
}

</mosaic_0001>

<llo_original>
// kernel: tpu_custom_call.1
$region0: #{tpu_custom_call.1}
  #allocation0 [shape = 'u32[]', space=smem, size = 0x4, offset = 0x4, fixed_abs, tag = 'smem constant byte address 0x4 - core index']
  #allocation1 [shape = 'u32[144,128]{1,0:T(1,128)}', space=vmem, size = 0x12000, scoped, tag = 'internal scratch']
  #allocation2 [shape = 'f32[10,64]{1,0:T(8,128)}', space=vmem, size = 0x2000, scoped, tag = 'scratch operand']
  %s0 = inlined_call_operand.hbm [shape: f32[2,16,64], index: 0, kind: input, shape index: {}]
  %s1 = inlined_call_operand.hbm [shape: f32[2,16,64], index: 1, kind: input, shape index: {}]
  %s2 = inlined_call_operand.hbm [shape: f32[2,16,64], index: 2, kind: input, shape index: {}]
  %s3 = inlined_call_operand.vmem [shape: f32[1,64], index: 3, kind: input, shape index: {}]
  %s4 = inlined_call_operand.vmem [shape: f32[1,64], index: 4, kind: input, shape index: {}]
  %s5 = inlined_call_operand.hbm [shape: f32[3,64,64], index: 5, kind: input, shape index: {}]
  %s6 = inlined_call_operand.vmem [shape: f32[1,64], index: 6, kind: input, shape index: {}]
  %s7 = inlined_call_operand.hbm [shape: f32[2,16,64], index: 7, kind: output, shape index: {}]
  %s8 = sld [smem:[#allocation0]]
  $region77: #{tpu_custom_call.1} parent=0
    _
  %s10 = ssub.s32 1, %s8
  %s11 = scalar_select 0, %s10, %s8
  $region1: #{tpu_custom_call.1} parent=0
    #allocation3 [shape = 'u8[8192]{0}', space=vmem, size = 0x2000, scoped, tag = 'input window, operand 0']
    #allocation4 [shape = 's32[2]{0}', space=sflag, size = 0x8, scoped, tag = 'scoped memory for tpu_custom_call.1']
    #allocation5 [shape = 's32[2]{0}', space=sflag, size = 0x8, scoped, tag = 'scoped memory for tpu_custom_call.1']
    #allocation6 [shape = 'u8[8192]{0}', space=vmem, size = 0x2000, scoped, tag = 'input window, operand 1']
    #allocation7 [shape = 's32[2]{0}', space=sflag, size = 0x8, scoped, tag = 'scoped memory for tpu_custom_call.1']
    #allocation8 [shape = 'u8[8192]{0}', space=vmem, size = 0x2000, scoped, tag = 'input window, operand 2']
    #allocation9 [shape = 'u8[98304]{0}', space=vmem, size = 0x18000, scoped, tag = 'input window, operand 5, single buffered']
    #allocation10 [shape = 's32[1]{0}', space=sflag, size = 0x4, scoped, tag = 'scoped memory for tpu_custom_call.1']
    #allocation11 [shape = 'u8[8192]{0}', space=vmem, size = 0x2000, scoped, tag = 'output window, operand 0']
    %12 = vsyncpa [#allocation4], 0
    %s13 = scalar_lea.sflag [#allocation4], 1
    %14 = vsyncpa %s13, 0
    %15 = vsyncpa [#allocation7], 0
    %s16 = scalar_lea.sflag [#allocation7], 1
    %17 = vsyncpa %s16, 0
    %18 = vsyncpa [#allocation10], 0
    %19 = vsyncpa [#allocation5], 0
    %s20 = scalar_lea.sflag [#allocation5], 1
    %21 = vsyncpa %s20, 0
    loop: start=0, step=1, limit=6
    $region2: #{tpu_custom_call.1} parent=1 // loop_pre_header
      _
    $region3: #{tpu_custom_call.1} parent=1 // loop_header
      %s23 = sphi 0, %s27
      %p24 = scmp.ge.s32.totalorder %s23, 6
      %s30 = sphi 0, %s42
      %s31 = sphi 0, %s38
      %s32 = sphi 0, %s30
      %s33 = sphi 0, %s31
      %s34 = sphi 0, %s32
      %s35 = sphi 0, %s33
      %s47 = sphi 0, %s49
      %s50 = sphi 0, %s47
      %s51 = sphi 0, %s50
      %s67 = sphi 0, %s51
      %s81 = sphi 0, %s83
      %s84 = sphi 0, %s81
      %s85 = sphi 0, %s84
      %s101 = sphi 0, %s85
      %s115 = sphi 0, %s117
      %s118 = sphi 0, %s115
      %s119 = sphi 0, %s118
      %s135 = sphi 0, %s119
      %s139 = sphi 0, %s139
      %s141 = sphi 0, %s139
      %s142 = sphi 0, %s141
      %s156 = sphi 0, %s142
      %s160 = sphi 0, %s160
      %s162 = sphi 0, %s160
      %s163 = sphi 0, %s162
      %s177 = sphi 0, %s163
      %s181 = sphi 0, %s181
      %s183 = sphi 0, %s181
      %s184 = sphi 0, %s183
      %s198 = sphi 0, %s184
      %s202 = sphi 0, %s202
      %s204 = sphi 0, %s202
      %s205 = sphi 0, %s204
      %s219 = sphi 0, %s205
      %s227 = sphi 0, %s229
      %s230 = sphi 0, %s227
      %s231 = sphi 0, %s230
      %s247 = sphi 0, %s231
    $region4: #{tpu_custom_call.1} parent=1 // loop_header_branch
      %26 = sbr.rel (%p24) target = $region8
    $region5: #{tpu_custom_call.1} parent=1 // loop_body
      %s28 = ssub.s32 %s23, 1
      %s29 = ssub.s32 %s23, 2
      %s36 = sadd.s32 1, %s31
      %p37 = scmp.ge.s32.totalorder %s36, 2
      %s38 = scalar_select %p37, 0, %s36
      %s39 = sadd.s32 1, %s30
      %s40 = scalar_select %p37, %s39, %s30
      %p41 = scmp.ge.s32.totalorder %s40, 2
      %s42 = scalar_select %p41, 0, %s40
      %s43 = ssub.s32 %s30, %s42
      %s44 = ssub.s32 %s31, %s38
      %s45 = sor.u32 %s43, %s44
      %p46 = scmp.eq.s32.totalorder %s45, 0
      %s48 = sadd.s32 %s47, 1
      %s49 = scalar_select %p46, %s47, %s48
      %p52 = pneg %p46
      %p53 = scmp.eq.s32.totalorder %s23, 3
      %p54 = por %p52, %p53
      %p55 = scmp.ne.s32.totalorder %s47, %s50
      %p56 = scmp.eq.s32.totalorder %s23, 0
      %p57 = por %p55, %p56
      %p58 = scmp.ne.s32.totalorder %s47, %s50
      %p59 = scmp.eq.s32.totalorder %s28, 3
      %p60 = por %p58, %p59
      %p61 = scmp.ne.s32.totalorder %s50, %s51
      %p62 = scmp.eq.s32.totalorder %s28, 0
      %p63 = por %p61, %p62
      %p64 = scmp.ne.s32.totalorder %s50, %s51
      %p65 = scmp.eq.s32.totalorder %s29, 3
      %p66 = por %p64, %p65
      %p68 = scmp.ne.s32.totalorder %s51, %s67
      %p69 = scmp.eq.s32.totalorder %s29, 0
      %p70 = por %p68, %p69
      %s71 = ssub.s32 %s31, 1
      %p72 = scmp.gt.s32.totalorder %s71, 0
      %s73 = scalar_select %p72, %s71, 0
      %s74 = ssub.s32 %s38, 1
      %p75 = scmp.gt.s32.totalorder %s74, 0
      %s76 = scalar_select %p75, %s74, 0
      %s77 = ssub.s32 %s30, %s42
      %s78 = ssub.s32 %s73, %s76
      %s79 = sor.u32 %s77, %s78
      %p80 = scmp.eq.s32.totalorder %s79, 0
      %s82 = sadd.s32 %s81, 1
      %s83 = scalar_select %p80, %s81, %s82
      %p86 = pneg %p80
      %p87 = scmp.eq.s32.totalorder %s23, 3
      %p88 = por %p86, %p87
      %p89 = scmp.ne.s32.totalorder %s81, %s84
      %p90 = scmp.eq.s32.totalorder %s23, 0
      %p91 = por %p89, %p90
      %p92 = scmp.ne.s32.totalorder %s81, %s84
      %p93 = scmp.eq.s32.totalorder %s28, 3
      %p94 = por %p92, %p93
      %p95 = scmp.ne.s32.totalorder %s84, %s85
      %p96 = scmp.eq.s32.totalorder %s28, 0
      %p97 = por %p95, %p96
      %p98 = scmp.ne.s32.totalorder %s84, %s85
      %p99 = scmp.eq.s32.totalorder %s29, 3
      %p100 = por %p98, %p99
      %p102 = scmp.ne.s32.totalorder %s85, %s101
      %p103 = scmp.eq.s32.totalorder %s29, 0
      %p104 = por %p102, %p103
      %s105 = sadd.s32 %s31, 1
      %p106 = scmp.lt.s32.totalorder %s105, 1
      %s107 = scalar_select %p106, %s105, 1
      %s108 = sadd.s32 %s38, 1
      %p109 = scmp.lt.s32.totalorder %s108, 1
      %s110 = scalar_select %p109, %s108, 1
      %s111 = ssub.s32 %s30, %s42
      %s112 = ssub.s32 %s107, %s110
      %s113 = sor.u32 %s111, %s112
      %p114 = scmp.eq.s32.totalorder %s113, 0
      %s116 = sadd.s32 %s115, 1
      %s117 = scalar_select %p114, %s115, %s116
      %p120 = pneg %p114
      %p121 = scmp.eq.s32.totalorder %s23, 3
      %p122 = por %p120, %p121
      %p123 = scmp.ne.s32.totalorder %s115, %s118
      %p124 = scmp.eq.s32.totalorder %s23, 0
      %p125 = por %p123, %p124
      %p126 = scmp.ne.s32.totalorder %s115, %s118
      %p127 = scmp.eq.s32.totalorder %s28, 3
      %p128 = por %p126, %p127
      %p129 = scmp.ne.s32.totalorder %s118, %s119
      %p130 = scmp.eq.s32.totalorder %s28, 0
      %p131 = por %p129, %p130
      %p132 = scmp.ne.s32.totalorder %s118, %s119
      %p133 = scmp.eq.s32.totalorder %s29, 3
      %p134 = por %p132, %p133
      %p136 = scmp.ne.s32.totalorder %s119, %s135
      %p137 = scmp.eq.s32.totalorder %s29, 0
      %p138 = por %p136, %p137
      %s140 = sadd.s32 %s139, 1
      %p143 = scmp.eq.s32.totalorder %s23, 3
      %p144 = scmp.ne.s32.totalorder %s139, %s141
      %p145 = scmp.eq.s32.totalorder %s23, 0
      %p146 = por %p144, %p145
      %p147 = scmp.ne.s32.totalorder %s139, %s141
      %p148 = scmp.eq.s32.totalorder %s28, 3
      %p149 = por %p147, %p148
      %p150 = scmp.ne.s32.totalorder %s141, %s142
      %p151 = scmp.eq.s32.totalorder %s28, 0
      %p152 = por %p150, %p151
      %p153 = scmp.ne.s32.totalorder %s141, %s142
      %p154 = scmp.eq.s32.totalorder %s29, 3
      %p155 = por %p153, %p154
      %p157 = scmp.ne.s32.totalorder %s142, %s156
      %p158 = scmp.eq.s32.totalorder %s29, 0
      %p159 = por %p157, %p158
      %s161 = sadd.s32 %s160, 1
      %p164 = scmp.eq.s32.totalorder %s23, 3
      %p165 = scmp.ne.s32.totalorder %s160, %s162
      %p166 = scmp.eq.s32.totalorder %s23, 0
      %p167 = por %p165, %p166
      %p168 = scmp.ne.s32.totalorder %s160, %s162
      %p169 = scmp.eq.s32.totalorder %s28, 3
      %p170 = por %p168, %p169
      %p171 = scmp.ne.s32.totalorder %s162, %s163
      %p172 = scmp.eq.s32.totalorder %s28, 0
      %p173 = por %p171, %p172
      %p174 = scmp.ne.s32.totalorder %s162, %s163
      %p175 = scmp.eq.s32.totalorder %s29, 3
      %p176 = por %p174, %p175
      %p178 = scmp.ne.s32.totalorder %s163, %s177
      %p179 = scmp.eq.s32.totalorder %s29, 0
      %p180 = por %p178, %p179
      %s182 = sadd.s32 %s181, 1
      %p185 = scmp.eq.s32.totalorder %s23, 3
      %p186 = scmp.ne.s32.totalorder %s181, %s183
      %p187 = scmp.eq.s32.totalorder %s23, 0
      %p188 = por %p186, %p187
      %p189 = scmp.ne.s32.totalorder %s181, %s183
      %p190 = scmp.eq.s32.totalorder %s28, 3
      %p191 = por %p189, %p190
      %p192 = scmp.ne.s32.totalorder %s183, %s184
      %p193 = scmp.eq.s32.totalorder %s28, 0
      %p194 = por %p192, %p193
      %p195 = scmp.ne.s32.totalorder %s183, %s184
      %p196 = scmp.eq.s32.totalorder %s29, 3
      %p197 = por %p195, %p196
      %p199 = scmp.ne.s32.totalorder %s184, %s198
      %p200 = scmp.eq.s32.totalorder %s29, 0
      %p201 = por %p199, %p200
      %s203 = sadd.s32 %s202, 1
      %p206 = scmp.eq.s32.totalorder %s23, 3
      %p207 = scmp.ne.s32.totalorder %s202, %s204
      %p208 = scmp.eq.s32.totalorder %s23, 0
      %p209 = por %p207, %p208
      %p210 = scmp.ne.s32.totalorder %s202, %s204
      %p211 = scmp.eq.s32.totalorder %s28, 3
      %p212 = por %p210, %p211
      %p213 = scmp.ne.s32.totalorder %s204, %s205
      %p214 = scmp.eq.s32.totalorder %s28, 0
      %p215 = por %p213, %p214
      %p216 = scmp.ne.s32.totalorder %s204, %s205
      %p217 = scmp.eq.s32.totalorder %s29, 3
      %p218 = por %p216, %p217
      %p220 = scmp.ne.s32.totalorder %s205, %s219
      %p221 = scmp.eq.s32.totalorder %s29, 0
      %p222 = por %p220, %p221
      %s223 = ssub.s32 %s30, %s42
      %s224 = ssub.s32 %s31, %s38
      %s225 = sor.u32 %s223, %s224
      %p226 = scmp.eq.s32.totalorder %s225, 0
      %s228 = sadd.s32 %s227, 1
      %s229 = scalar_select %p226, %s227, %s228
      %p232 = pneg %p226
      %p233 = scmp.eq.s32.totalorder %s23, 3
      %p234 = por %p232, %p233
      %p235 = scmp.ne.s32.totalorder %s227, %s230
      %p236 = scmp.eq.s32.totalorder %s23, 0
      %p237 = por %p235, %p236
      %p238 = scmp.ne.s32.totalorder %s227, %s230
      %p239 = scmp.eq.s32.totalorder %s28, 3
      %p240 = por %p238, %p239
      %p241 = scmp.ne.s32.totalorder %s230, %s231
      %p242 = scmp.eq.s32.totalorder %s28, 0
      %p243 = por %p241, %p242
      %p244 = scmp.ne.s32.totalorder %s230, %s231
      %p245 = scmp.eq.s32.totalorder %s29, 3
      %p246 = por %p244, %p245
      %p248 = scmp.ne.s32.totalorder %s231, %s247
      %p249 = scmp.eq.s32.totalorder %s29, 0
      %p250 = por %p248, %p249
      %p251 = scmp.le.s32.totalorder 1, %s23
      %p252 = scmp.lt.s32.totalorder %s23, 5
      %p253 = pnand %p251, %p252
      %p254 = pneg %p253
      // Predicated region
      $region9: #{tpu_custom_call.1} parent=5 // pred_check
        _
      $region10: #{tpu_custom_call.1} parent=5 // pred_check_branch
        %256 = sbr.rel (%p253) target = $region12
      $region11: #{tpu_custom_call.1} parent=5 // pred_region
        %s257 = ssub.s32 %s23, 1
        // Predicated region
        $region13: #{tpu_custom_call.1} parent=11 // pred_check
          %p258 = pneg %p152
        $region14: #{tpu_custom_call.1} parent=11 // pred_check_branch
          %260 = sbr.rel (%p258) target = $region16
        $region15: #{tpu_custom_call.1} parent=11 // pred_region
          _
        $region16: #{tpu_custom_call.1} parent=11 // pred_fallthru
          _
        // Predicated region
        $region17: #{tpu_custom_call.1} parent=11 // pred_check
          %p261 = pneg %p173
        $region18: #{tpu_custom_call.1} parent=11 // pred_check_branch
          %263 = sbr.rel (%p261) target = $region20
        $region19: #{tpu_custom_call.1} parent=11 // pred_region
          _
        $region20: #{tpu_custom_call.1} parent=11 // pred_fallthru
          _
        // Predicated region
        $region21: #{tpu_custom_call.1} parent=11 // pred_check
          %p264 = pneg %p194
        $region22: #{tpu_custom_call.1} parent=11 // pred_check_branch
          %266 = sbr.rel (%p264) target = $region24
        $region23: #{tpu_custom_call.1} parent=11 // pred_region
          %s268 = ssub.s32 3072, 3072
          %269 = vsyncadd [#allocation10], %s268
          %s270 = sshll.u32 [#allocation9], 4
          %s271 = int_to_ptr.vmem [resolvable:$true] %s270
          %276 = dma.hbm_to_vmem [thread:$0]  %s5, 3072, %s271, [#allocation10], 128, 128, 8
        $region24: #{tpu_custom_call.1} parent=11 // pred_fallthru
          _
        // Predicated region
        $region25: #{tpu_custom_call.1} parent=11 // pred_check
          %p277 = pneg %p215
        $region26: #{tpu_custom_call.1} parent=11 // pred_check_branch
          %279 = sbr.rel (%p277) target = $region28
        $region27: #{tpu_custom_call.1} parent=11 // pred_region
          _
        $region28: #{tpu_custom_call.1} parent=11 // pred_fallthru
          _
      $region12: #{tpu_custom_call.1} parent=5 // pred_fallthru
        _
      %p280 = scmp.lt.s32.totalorder %s23, 4
      // Predicated region
      $region29: #{tpu_custom_call.1} parent=5 // pred_check
        %p281 = pneg %p280
      $region30: #{tpu_custom_call.1} parent=5 // pred_check_branch
        %283 = sbr.rel (%p281) target = $region32
      $region31: #{tpu_custom_call.1} parent=5 // pred_region
        // Predicated region
        $region33: #{tpu_custom_call.1} parent=31 // pred_check
          %p284 = pneg %p57
        $region34: #{tpu_custom_call.1} parent=31 // pred_check_branch
          %286 = sbr.rel (%p284) target = $region36
        $region35: #{tpu_custom_call.1} parent=31 // pred_region
          %s287 = sand.u32 %s47, 1
          %s288 = scalar_lea.sflag [#allocation4], %s287
          %s289 = sand.u32 %s47, 1
          %s290 = smul.addr %s289, 8
          %s291 = scalar_lea.vmem [#allocation3], %s290
          %s293 = ssub.s32 128, 128
          %294 = vsyncadd %s288, %s293
          %s295 = smul.addr %s30, 2
          %s296 = sadd.s32 %s31, %s295
          %s297 = smul.addr %s296, 128
          %s298 = scalar_lea.hbm %s0, %s297
          %s300 = sshll.u32 %s291, 4
          %s301 = int_to_ptr.vmem [resolvable:$true] %s300
          %303 = dma.hbm_to_vmem [thread:$0]  %s298, 128, %s301, %s288
        $region36: #{tpu_custom_call.1} parent=31 // pred_fallthru
          _
        // Predicated region
        $region37: #{tpu_custom_call.1} parent=31 // pred_check
          %p304 = pneg %p91
        $region38: #{tpu_custom_call.1} parent=31 // pred_check_branch
          %306 = sbr.rel (%p304) target = $region40
        $region39: #{tpu_custom_call.1} parent=31 // pred_region
          %s307 = sand.u32 %s23, 1
          %s308 = scalar_lea.sflag [#allocation7], %s307
          %s309 = sand.u32 %s81, 1
          %s310 = smul.addr %s309, 8
          %s311 = scalar_lea.vmem [#allocation6], %s310
          %s312 = ssub.s32 %s31, 1
          %p313 = scmp.gt.s32.totalorder %s312, 0
          %s314 = scalar_select %p313, %s312, 0
          %s316 = ssub.s32 128, 128
          %317 = vsyncadd %s308, %s316
          %s318 = smul.addr %s30, 2
          %s319 = sadd.s32 %s314, %s318
          %s320 = smul.addr %s319, 128
          %s321 = scalar_lea.hbm %s1, %s320
          %s323 = sshll.u32 %s311, 4
          %s324 = int_to_ptr.vmem [resolvable:$true] %s323
          %326 = dma.hbm_to_vmem [thread:$0]  %s321, 128, %s324, %s308
        $region40: #{tpu_custom_call.1} parent=31 // pred_fallthru
          _
        // Predicated region
        $region41: #{tpu_custom_call.1} parent=31 // pred_check
          %p327 = pneg %p125
        $region42: #{tpu_custom_call.1} parent=31 // pred_check_branch
          %329 = sbr.rel (%p327) target = $region44
        $region43: #{tpu_custom_call.1} parent=31 // pred_region
          %s330 = sand.u32 %s23, 1
          %s331 = scalar_lea.sflag [#allocation7], %s330
          %s332 = sand.u32 %s115, 1
          %s333 = smul.addr %s332, 8
          %s334 = scalar_lea.vmem [#allocation8], %s333
          %s335 = sadd.s32 %s31, 1
          %p336 = scmp.lt.s32.totalorder %s335, 1
          %s337 = scalar_select %p336, %s335, 1
          %s339 = ssub.s32 128, 128
          %340 = vsyncadd %s331, %s339
          %s341 = smul.addr %s30, 2
          %s342 = sadd.s32 %s337, %s341
          %s343 = smul.addr %s342, 128
          %s344 = scalar_lea.hbm %s2, %s343
          %s346 = sshll.u32 %s334, 4
          %s347 = int_to_ptr.vmem [resolvable:$true] %s346
          %349 = dma.hbm_to_vmem [thread:$0]  %s344, 128, %s347, %s331
        $region44: #{tpu_custom_call.1} parent=31 // pred_fallthru
          _
      $region32: #{tpu_custom_call.1} parent=5 // pred_fallthru
        _
      %p350 = scmp.le.s32.totalorder 1, %s23
      %p351 = scmp.lt.s32.totalorder %s23, 5
      %p352 = pnand %p350, %p351
      %p353 = pneg %p352
      // Predicated region
      $region45: #{tpu_custom_call.1} parent=5 // pred_check
        _
      $region46: #{tpu_custom_call.1} parent=5 // pred_check_branch
        %355 = sbr.rel (%p352) target = $region48
      $region47: #{tpu_custom_call.1} parent=5 // pred_region
        %s356 = ssub.s32 %s23, 1
        %s357 = sand.u32 %s50, 1
        %s358 = scalar_lea.sflag [#allocation4], %s357
        %s359 = sand.u32 %s50, 1
        %s360 = smul.addr %s359, 8
        %s361 = scalar_lea.vmem [#allocation3], %s360
        // Predicated region
        $region49: #{tpu_custom_call.1} parent=47 // pred_check
          %p362 = pneg %p63
        $region50: #{tpu_custom_call.1} parent=47 // pred_check_branch
          %364 = sbr.rel (%p362) target = $region52
        $region51: #{tpu_custom_call.1} parent=47 // pred_region
          %365 = dma.done %s358, 128
        $region52: #{tpu_custom_call.1} parent=47 // pred_fallthru
          _
        %s366 = sand.u32 %s28, 1
        %s367 = scalar_lea.sflag [#allocation7], %s366
        %s368 = sand.u32 %s84, 1
        %s369 = smul.addr %s368, 8
        %s370 = scalar_lea.vmem [#allocation6], %s369
        // Predicated region
        $region53: #{tpu_custom_call.1} parent=47 // pred_check
          %p371 = pneg %p97
        $region54: #{tpu_custom_call.1} parent=47 // pred_check_branch
          %373 = sbr.rel (%p371) target = $region56
        $region55: #{tpu_custom_call.1} parent=47 // pred_region
          %374 = dma.done %s367, 128
        $region56: #{tpu_custom_call.1} parent=47 // pred_fallthru
          _
        %s375 = sand.u32 %s28, 1
        %s376 = scalar_lea.sflag [#allocation7], %s375
        %s377 = sand.u32 %s118, 1
        %s378 = smul.addr %s377, 8
        %s379 = scalar_lea.vmem [#allocation8], %s378
        // Predicated region
        $region57: #{tpu_custom_call.1} parent=47 // pred_check
          %p380 = pneg %p131
        $region58: #{tpu_custom_call.1} parent=47 // pred_check_branch
          %382 = sbr.rel (%p380) target = $region60
        $region59: #{tpu_custom_call.1} parent=47 // pred_region
          %383 = dma.done %s376, 128
        $region60: #{tpu_custom_call.1} parent=47 // pred_fallthru
          _
        // Predicated region
        $region61: #{tpu_custom_call.1} parent=47 // pred_check
          %p384 = pneg %p194
        $region62: #{tpu_custom_call.1} parent=47 // pred_check_branch
          %386 = sbr.rel (%p384) target = $region64
        $region63: #{tpu_custom_call.1} parent=47 // pred_region
          %387 = dma.done [#allocation10], 3072
        $region64: #{tpu_custom_call.1} parent=47 // pred_fallthru
          _
        %s388 = sand.u32 %s50, 1
        %s389 = scalar_lea.sflag [#allocation4], %s388
        %s390 = sand.u32 %s50, 1
        %s391 = smul.addr %s390, 8
        %s392 = scalar_lea.vmem [#allocation3], %s391
        %p393 = pneg %p63
        %p394 = pneg %p60
        %s395 = sand.u32 %s28, 1
        %s396 = scalar_lea.sflag [#allocation7], %s395
        %s397 = sand.u32 %s84, 1
        %s398 = smul.addr %s397, 8
        %s399 = scalar_lea.vmem [#allocation6], %s398
        %p400 = pneg %p97
        %p401 = pneg %p94
        %s402 = sand.u32 %s28, 1
        %s403 = scalar_lea.sflag [#allocation7], %s402
        %s404 = sand.u32 %s118, 1
        %s405 = smul.addr %s404, 8
        %s406 = scalar_lea.vmem [#allocation8], %s405
        %p407 = pneg %p131
        %p408 = pneg %p128
        %p409 = pneg %p152
        %p410 = pneg %p149
        %p411 = pneg %p173
        %p412 = pneg %p170
        %p413 = pneg %p194
        %p414 = pneg %p191
        %p415 = pneg %p215
        %p416 = pneg %p212
        %p417 = pneg %p243
        %p418 = pneg %p240
        %s419 = sand.u32 %s230, 1
        %s420 = scalar_lea.sflag [#allocation5], %s419
        %s421 = sand.u32 %s230, 1
        %s422 = smul.addr %s421, 8
        %s423 = scalar_lea.vmem [#allocation11], %s422
        %s424 = ssub.s32 %s33, 1
        %p425 = scmp.gt.s32.totalorder %s424, 0
        %s426 = scalar_select %p425, %s424, 0
        %s427 = sadd.s32 %s33, 1
        %p428 = scmp.lt.s32.totalorder %s427, 1
        %s429 = scalar_select %p428, %s427, 1
        %v430 = vld [vmem:[%s3] sm:$0x1]
        %v431 = vld [vmem:[%s4] sm:$0x1]
        %v432 = vld [vmem:[%s361] sm:$0xff]
        %v434 = vlaneseq
        %v435 = vshrl.u32 %v434, 7
        %v436 = vsub.s32 0, %v435
        %v437 = vrot.slane %v430, %v436
        %v439 = vmul.f32 %v432, %v437
        %v441 = vlaneseq
        %v442 = vshrl.u32 %v441, 7
        %v443 = vsub.s32 0, %v442
        %v444 = vrot.slane %v431, %v443
        %v446 = vadd.f32 %v439, %v444
        %vm447 = vcmp.ge.f32.partialorder %v446, 0.0
        %v448 = vmul.f32 %v446, 0.2
        %v449 = vsel %vm447, %v446, %v448
        %vm450 = vcmask 523264
        %451 = vst.msk [vmem:[#allocation2 + $0x1] sm:$0xff] %vm450, %v449
        %v452 = vld [vmem:[%s370 + $0x7] sm:$0x1]
        %v453 = vmul.f32 %v452, %v430
        %v454 = vadd.f32 %v453, %v431
        %vm455 = vcmp.ge.f32.partialorder %v454, 0.0
        %v456 = vmul.f32 %v454, 0.2
        %v457 = vsel %vm455, %v454, %v456
        %v458 = vld [vmem:[%s379] sm:$0x1]
        %v459 = vmul.f32 %v458, %v430
        %v460 = vadd.f32 %v459, %v431
        %vm461 = vcmp.ge.f32.partialorder %v460, 0.0
        %v462 = vmul.f32 %v460, 0.2
        %v463 = vsel %vm461, %v460, %v462
        %p464 = scmp.eq.s32.totalorder %s33, 0
        %s465 = scalar_select %p464, 1, 0
        %v466 = vstv %s465
        %vm467 = vcmp.eq.s32.totalorder %v466, 1
        %v468 = vsel %vm467, 0.0, %v457
        %vm469 = vcmask 516096
        %470 = vst.msk [vmem:[#allocation2] sm:$0x1] %vm469, %v468
        %p471 = scmp.eq.s32.totalorder %s33, 1
        %s472 = scalar_select %p471, 1, 0
        %v473 = vstv %s472
        %vm474 = vcmp.eq.s32.totalorder %v473, 1
        %v475 = vsel %vm474, 0.0, %v463
        %476 = vst.msk [vmem:[#allocation2 + $0x9] sm:$0x1] %vm469, %v475
        %v477 = vld [vmem:[#allocation2] sm:$0xff]
        %v478 = vld [vmem:[#allocation9] sm:$0xff]
        %v479 = vld [vmem:[#allocation9 + $0x8] sm:$0xff]
        %v480 = vld [vmem:[#allocation9 + $0x10] sm:$0xff]
        %v481 = vld [vmem:[#allocation9 + $0x18] sm:$0xff]
        %v482 = vld [vmem:[#allocation9 + $0x20] sm:$0xff]
        %v483 = vld [vmem:[#allocation9 + $0x28] sm:$0xff]
        %v484 = vld [vmem:[#allocation9 + $0x30] sm:$0xff]
        %v485 = vld [vmem:[#allocation9 + $0x38] sm:$0xff]
        %v486 = vld [vmem:[#allocation2 + $0x1] sm:$0xff]
        %s487 = scalar_lea.vmem [#allocation9], 64
        %v488 = vld [vmem:[%s487] sm:$0xff]
        %v489 = vld [vmem:[%s487 + $0x8] sm:$0xff]
        %v490 = vld [vmem:[%s487 + $0x10] sm:$0xff]
        %v491 = vld [vmem:[%s487 + $0x18] sm:$0xff]
        %v492 = vld [vmem:[%s487 + $0x20] sm:$0xff]
        %v493 = vld [vmem:[%s487 + $0x28] sm:$0xff]
        %v494 = vld [vmem:[%s487 + $0x30] sm:$0xff]
        %v495 = vld [vmem:[%s487 + $0x38] sm:$0xff]
        %v497 = vsel %vm450, %v486, 0
        %499 = vmatprep.subr.mxu0 0.0
        %500 = vmatpush1.msra.mxu0 %v488
        %501 = vmatprep.subr.mxu0 0.0
        %502 = vmatpush1.msra.mxu0 %v489
        %503 = vmatprep.subr.mxu0 0.0
        %504 = vmatpush1.msra.mxu0 %v490
        %505 = vmatprep.subr.mxu0 0.0
        %506 = vmatpush1.msra.mxu0 %v491
        %507 = vmatprep.subr.mxu0 0.0
        %508 = vmatpush1.msra.mxu0 %v492
        %509 = vmatprep.subr.mxu0 0.0
        %510 = vmatpush1.msra.mxu0 %v493
        %511 = vmatprep.subr.mxu0 0.0
        %512 = vmatpush1.msra.mxu0 %v494
        %513 = vmatprep.subr.mxu0 0.0
        %514 = vmatpush1.msra.mxu0 %v495
        %515 = vmatprep.subr.mxu0 0.0
        %516 = vmatpush1.msra.mxu0 0.0
        %517 = vmatprep.subr.mxu0 0.0
        %518 = vmatpush1.msra.mxu0 0.0
        %519 = vmatprep.subr.mxu0 0.0
        %520 = vmatpush1.msra.mxu0 0.0
        %521 = vmatprep.subr.mxu0 0.0
        %522 = vmatpush1.msra.mxu0 0.0
        %523 = vmatprep.subr.mxu0 0.0
        %524 = vmatpush1.msra.mxu0 0.0
        %525 = vmatprep.subr.mxu0 0.0
        %526 = vmatpush1.msra.mxu0 0.0
        %527 = vmatprep.subr.mxu0 0.0
        %528 = vmatpush1.msra.mxu0 0.0
        %529 = vmatprep.subr.mxu0 0.0
        %530 = vmatpush1.msra.mxu0 0.0
        %531 = vmatprep.subr.mxu0 0.0
        %532 = vmatpush1.msra.mxu0 0.0
        %533 = vmatprep.subr.mxu0 0.0
        %534 = vmatpush1.msra.mxu0 0.0
        %535 = vmatprep.subr.mxu0 0.0
        %536 = vmatpush1.msra.mxu0 0.0
        %537 = vmatprep.subr.mxu0 0.0
        %538 = vmatpush1.msra.mxu0 0.0
        %539 = vmatprep.subr.mxu0 0.0
        %540 = vmatpush1.msra.mxu0 0.0
        %541 = vmatprep.subr.mxu0 0.0
        %542 = vmatpush1.msra.mxu0 0.0
        %543 = vmatprep.subr.mxu0 0.0
        %544 = vmatpush1.msra.mxu0 0.0
        %545 = vmatprep.subr.mxu0 0.0
        %546 = vmatpush1.msra.mxu0 0.0
        %547 = vmatprep.subr.mxu0 0.0
        %548 = vmatpush1.msra.mxu0 0.0
        %549 = vmatprep.subr.mxu0 0.0
        %550 = vmatpush1.msra.mxu0 0.0
        %551 = vmatprep.subr.mxu0 0.0
        %552 = vmatpush1.msra.mxu0 0.0
        %553 = vmatprep.subr.mxu0 0.0
        %554 = vmatpush1.msra.mxu0 0.0
        %555 = vmatprep.subr.mxu0 0.0
        %556 = vmatpush1.msra.mxu0 0.0
        %557 = vmatprep.subr.mxu0 0.0
        %558 = vmatpush1.msra.mxu0 0.0
        %559 = vmatprep.subr.mxu0 0.0
        %560 = vmatpush1.msra.mxu0 0.0
        %561 = vmatprep.subr.mxu0 0.0
        %562 = vmatpush1.msra.mxu0 0.0
        %563 = vmatprep.mubr.f32.mxu0 0.0
        %564 = vmatmul.mubr.f32.gmra.mrb[0].mxu0 %v497
        %v565 = vpop.f32.mrb[0].mxu0
        %v566 = vadd.f32 0.0, %v565
        %v567 = vpop.f32.mrb[0].mxu0
        %568 = vdwg.mxu0
        %v570 = vsel %vm450, %v477, 0
        %572 = vmatprep.subr.mxu0 0.0
        %573 = vmatpush1.msra.mxu0 %v478
        %574 = vmatprep.subr.mxu0 0.0
        %575 = vmatpush1.msra.mxu0 %v479
        %576 = vmatprep.subr.mxu0 0.0
        %577 = vmatpush1.msra.mxu0 %v480
        %578 = vmatprep.subr.mxu0 0.0
        %579 = vmatpush1.msra.mxu0 %v481
        %580 = vmatprep.subr.mxu0 0.0
        %581 = vmatpush1.msra.mxu0 %v482
        %582 = vmatprep.subr.mxu0 0.0
        %583 = vmatpush1.msra.mxu0 %v483
        %584 = vmatprep.subr.mxu0 0.0
        %585 = vmatpush1.msra.mxu0 %v484
        %586 = vmatprep.subr.mxu0 0.0
        %587 = vmatpush1.msra.mxu0 %v485
        %588 = vmatprep.subr.mxu0 0.0
        %589 = vmatpush1.msra.mxu0 0.0
        %590 = vmatprep.subr.mxu0 0.0
        %591 = vmatpush1.msra.mxu0 0.0
        %592 = vmatprep.subr.mxu0 0.0
        %593 = vmatpush1.msra.mxu0 0.0
        %594 = vmatprep.subr.mxu0 0.0
        %595 = vmatpush1.msra.mxu0 0.0
        %596 = vmatprep.subr.mxu0 0.0
        %597 = vmatpush1.msra.mxu0 0.0
        %598 = vmatprep.subr.mxu0 0.0
        %599 = vmatpush1.msra.mxu0 0.0
        %600 = vmatprep.subr.mxu0 0.0
        %601 = vmatpush1.msra.mxu0 0.0
        %602 = vmatprep.subr.mxu0 0.0
        %603 = vmatpush1.msra.mxu0 0.0
        %604 = vmatprep.subr.mxu0 0.0
        %605 = vmatpush1.msra.mxu0 0.0
        %606 = vmatprep.subr.mxu0 0.0
        %607 = vmatpush1.msra.mxu0 0.0
        %608 = vmatprep.subr.mxu0 0.0
        %609 = vmatpush1.msra.mxu0 0.0
        %610 = vmatprep.subr.mxu0 0.0
        %611 = vmatpush1.msra.mxu0 0.0
        %612 = vmatprep.subr.mxu0 0.0
        %613 = vmatpush1.msra.mxu0 0.0
        %614 = vmatprep.subr.mxu0 0.0
        %615 = vmatpush1.msra.mxu0 0.0
        %616 = vmatprep.subr.mxu0 0.0
        %617 = vmatpush1.msra.mxu0 0.0
        %618 = vmatprep.subr.mxu0 0.0
        %619 = vmatpush1.msra.mxu0 0.0
        %620 = vmatprep.subr.mxu0 0.0
        %621 = vmatpush1.msra.mxu0 0.0
        %622 = vmatprep.subr.mxu0 0.0
        %623 = vmatpush1.msra.mxu0 0.0
        %624 = vmatprep.subr.mxu0 0.0
        %625 = vmatpush1.msra.mxu0 0.0
        %626 = vmatprep.subr.mxu0 0.0
        %627 = vmatpush1.msra.mxu0 0.0
        %628 = vmatprep.subr.mxu0 0.0
        %629 = vmatpush1.msra.mxu0 0.0
        %630 = vmatprep.subr.mxu0 0.0
        %631 = vmatpush1.msra.mxu0 0.0
        %632 = vmatprep.subr.mxu0 0.0
        %633 = vmatpush1.msra.mxu0 0.0
        %634 = vmatprep.subr.mxu0 0.0
        %635 = vmatpush1.msra.mxu0 0.0
        %636 = vmatprep.mubr.f32.mxu0 0.0
        %637 = vmatmul.mubr.f32.gmra.mrb[0].mxu0 %v570
        %v638 = vpop.f32.mrb[0].mxu0
        %v639 = vadd.f32 %v566, %v638
        %v640 = vpop.f32.mrb[0].mxu0
        %641 = vdwg.mxu0
        %v642 = vld [vmem:[#allocation2 + $0x2] sm:$0xff]
        %s643 = scalar_lea.vmem [#allocation9], 128
        %v644 = vld [vmem:[%s643] sm:$0xff]
        %v645 = vld [vmem:[%s643 + $0x8] sm:$0xff]
        %v646 = vld [vmem:[%s643 + $0x10] sm:$0xff]
        %v647 = vld [vmem:[%s643 + $0x18] sm:$0xff]
        %v648 = vld [vmem:[%s643 + $0x20] sm:$0xff]
        %v649 = vld [vmem:[%s643 + $0x28] sm:$0xff]
        %v650 = vld [vmem:[%s643 + $0x30] sm:$0xff]
        %v651 = vld [vmem:[%s643 + $0x38] sm:$0xff]
        %v653 = vsel %vm450, %v642, 0
        %655 = vmatprep.subr.mxu0 0.0
        %656 = vmatpush1.msra.mxu0 %v644
        %657 = vmatprep.subr.mxu0 0.0
        %658 = vmatpush1.msra.mxu0 %v645
        %659 = vmatprep.subr.mxu0 0.0
        %660 = vmatpush1.msra.mxu0 %v646
        %661 = vmatprep.subr.mxu0 0.0
        %662 = vmatpush1.msra.mxu0 %v647
        %663 = vmatprep.subr.mxu0 0.0
        %664 = vmatpush1.msra.mxu0 %v648
        %665 = vmatprep.subr.mxu0 0.0
        %666 = vmatpush1.msra.mxu0 %v649
        %667 = vmatprep.subr.mxu0 0.0
        %668 = vmatpush1.msra.mxu0 %v650
        %669 = vmatprep.subr.mxu0 0.0
        %670 = vmatpush1.msra.mxu0 %v651
        %671 = vmatprep.subr.mxu0 0.0
        %672 = vmatpush1.msra.mxu0 0.0
        %673 = vmatprep.subr.mxu0 0.0
        %674 = vmatpush1.msra.mxu0 0.0
        %675 = vmatprep.subr.mxu0 0.0
        %676 = vmatpush1.msra.mxu0 0.0
        %677 = vmatprep.subr.mxu0 0.0
        %678 = vmatpush1.msra.mxu0 0.0
        %679 = vmatprep.subr.mxu0 0.0
        %680 = vmatpush1.msra.mxu0 0.0
        %681 = vmatprep.subr.mxu0 0.0
        %682 = vmatpush1.msra.mxu0 0.0
        %683 = vmatprep.subr.mxu0 0.0
        %684 = vmatpush1.msra.mxu0 0.0
        %685 = vmatprep.subr.mxu0 0.0
        %686 = vmatpush1.msra.mxu0 0.0
        %687 = vmatprep.subr.mxu0 0.0
        %688 = vmatpush1.msra.mxu0 0.0
        %689 = vmatprep.subr.mxu0 0.0
        %690 = vmatpush1.msra.mxu0 0.0
        %691 = vmatprep.subr.mxu0 0.0
        %692 = vmatpush1.msra.mxu0 0.0
        %693 = vmatprep.subr.mxu0 0.0
        %694 = vmatpush1.msra.mxu0 0.0
        %695 = vmatprep.subr.mxu0 0.0
        %696 = vmatpush1.msra.mxu0 0.0
        %697 = vmatprep.subr.mxu0 0.0
        %698 = vmatpush1.msra.mxu0 0.0
        %699 = vmatprep.subr.mxu0 0.0
        %700 = vmatpush1.msra.mxu0 0.0
        %701 = vmatprep.subr.mxu0 0.0
        %702 = vmatpush1.msra.mxu0 0.0
        %703 = vmatprep.subr.mxu0 0.0
        %704 = vmatpush1.msra.mxu0 0.0
        %705 = vmatprep.subr.mxu0 0.0
        %706 = vmatpush1.msra.mxu0 0.0
        %707 = vmatprep.subr.mxu0 0.0
        %708 = vmatpush1.msra.mxu0 0.0
        %709 = vmatprep.subr.mxu0 0.0
        %710 = vmatpush1.msra.mxu0 0.0
        %711 = vmatprep.subr.mxu0 0.0
        %712 = vmatpush1.msra.mxu0 0.0
        %713 = vmatprep.subr.mxu0 0.0
        %714 = vmatpush1.msra.mxu0 0.0
        %715 = vmatprep.subr.mxu0 0.0
        %716 = vmatpush1.msra.mxu0 0.0
        %717 = vmatprep.subr.mxu0 0.0
        %718 = vmatpush1.msra.mxu0 0.0
        %719 = vmatprep.mubr.f32.mxu0 0.0
        %720 = vmatmul.mubr.f32.gmra.mrb[0].mxu0 %v653
        %v721 = vpop.f32.mrb[0].mxu0
        %v722 = vadd.f32 0.0, %v721
        %v723 = vpop.f32.mrb[0].mxu0
        %724 = vdwg.mxu0
        %v725 = vadd.f32 %v639, %v722
        %v726 = vld [vmem:[%s6] sm:$0x1]
        %v728 = vlaneseq
        %v729 = vshrl.u32 %v728, 7
        %v730 = vsub.s32 0, %v729
        %v731 = vrot.slane %v726, %v730
        %v733 = vadd.f32 %v725, %v731
        %734 = vst.msk [vmem:[%s423] sm:$0xff] %vm450, %v733
        %s735 = sand.u32 %s230, 1
        %s736 = scalar_lea.sflag [#allocation5], %s735
        %s737 = sand.u32 %s230, 1
        %s738 = smul.addr %s737, 8
        %s739 = scalar_lea.vmem [#allocation11], %s738
        // Predicated region
        $region65: #{tpu_custom_call.1} parent=47 // pred_check
          %p740 = pneg %p240
        $region66: #{tpu_custom_call.1} parent=47 // pred_check_branch
          %742 = sbr.rel (%p740) target = $region68
        $region67: #{tpu_custom_call.1} parent=47 // pred_region
          %s744 = ssub.s32 128, 128
          %745 = vsyncadd %s736, %s744
          %s746 = smul.addr %s32, 2
          %s747 = sadd.s32 %s33, %s746
          %s748 = smul.addr %s747, 128
          %s749 = scalar_lea.hbm %s7, %s748
          %s751 = sshll.u32 %s739, 4
          %s752 = int_to_ptr.vmem [resolvable:$true] %s751
          %754 = dma.vmem_to_hbm [thread:$0]  %s752, 128, %s749, %s736
        $region68: #{tpu_custom_call.1} parent=47 // pred_fallthru
          _
      $region48: #{tpu_custom_call.1} parent=5 // pred_fallthru
        _
      %p755 = scmp.le.s32.totalorder 2, %s23
      // Predicated region
      $region69: #{tpu_custom_call.1} parent=5 // pred_check
        %p756 = pneg %p755
      $region70: #{tpu_custom_call.1} parent=5 // pred_check_branch
        %758 = sbr.rel (%p756) target = $region72
      $region71: #{tpu_custom_call.1} parent=5 // pred_region
        %s759 = ssub.s32 %s23, 2
        // Predicated region
        $region73: #{tpu_custom_call.1} parent=71 // pred_check
          %p760 = pneg %p246
        $region74: #{tpu_custom_call.1} parent=71 // pred_check_branch
          %762 = sbr.rel (%p760) target = $region76
        $region75: #{tpu_custom_call.1} parent=71 // pred_region
          %s763 = sand.u32 %s231, 1
          %s764 = scalar_lea.sflag [#allocation5], %s763
          %s765 = sand.u32 %s231, 1
          %s766 = smul.addr %s765, 8
          %s767 = scalar_lea.vmem [#allocation11], %s766
          %768 = dma.done %s764, 128
        $region76: #{tpu_custom_call.1} parent=71 // pred_fallthru
          _
      $region72: #{tpu_custom_call.1} parent=5 // pred_fallthru
        _
    $region6: #{tpu_custom_call.1} parent=1 // loop_footer
      %s27 = sadd.s32 1, %s23
    $region7: #{tpu_custom_call.1} parent=1 // loop_footer_branch
      %22 = sbr.rel target = $region3
    $region8: #{tpu_custom_call.1} parent=1 // loop_exit
      _
    %769 = vsyncpa [#allocation4], 1
    %s770 = scalar_lea.sflag [#allocation4], 1
    %771 = vsyncpa %s770, 1
    %772 = vsyncpa [#allocation7], 1
    %s773 = scalar_lea.sflag [#allocation7], 1
    %774 = vsyncpa %s773, 1
    %775 = vsyncpa [#allocation10], 1
    %776 = vsyncpa [#allocation5], 1
    %s777 = scalar_lea.sflag [#allocation5], 1
    %778 = vsyncpa %s777, 1

</llo_original>
